<compile_context>
chip_gen: v7x
topology: tpu7x:2x2x1
jax: 0.10.0
libtpu: 0.0.40
codegen_flags: <defaults>
</compile_context>

<pallas_src>
import jax
import jax.numpy as jnp
from jax.experimental import pallas as pl
from jax.experimental.pallas import tpu as pltpu

INPUT_DIM = 784
HIDDEN_DIM = 200
HIDDEN_PAD = 256          # 200 rounded up to a multiple of 128 (pad cols are zero)
LATENT_DIM = 20
HEAD_DIM = 2 * LATENT_DIM  # fused mu|logvar head width
MAX_TB = 1024              # batch tile (rows per grid step), multiple of 8


def _round_up(x, m):
    return ((x + m - 1) // m) * m


def encoder_kernel(x_ref, w1_ref, b1_ref, wh_ref, bh_ref, out_ref):
    # Cast the x tile to bf16 *inside* the kernel (VPU; hidden under the x DMA),
    # accumulate in f32 on the MXU.
    x_bf = x_ref[...].astype(jnp.bfloat16)
    h = jnp.dot(x_bf, w1_ref[...], preferred_element_type=jnp.float32)
    h = jnp.maximum(h + b1_ref[...], 0.0)                       # [TB, 256] f32

    # Fused heads: one matmul producing [TB, 40] = [mu | logvar].
    heads = jnp.dot(h.astype(wh_ref.dtype), wh_ref[...],
                    preferred_element_type=jnp.float32)
    heads = heads + bh_ref[...]

    # Columns [0, L) are mu (identity); columns [L, 2L) are logvar ->
    # sigma = exp(0.5 * logvar). Elementwise select keeps the epilogue
    # lane-parallel (exp runs on the otherwise idle EUP).
    col = jax.lax.broadcasted_iota(jnp.int32, heads.shape, 1)
    out = jnp.where(col < LATENT_DIM, heads, jnp.exp(0.5 * heads))
    out_ref[...] = out.astype(out_ref.dtype)


def encoder_forward(x, kernel_params):
    """x: [B, INPUT_DIM] f32. Returns (mu, sigma), each [B, LATENT_DIM] f32."""
    w1_bf, b1, wh_bf, bh = kernel_params
    B = x.shape[0]

    # Batch tile: multiple of 8 sublanes, >= 2 grid steps for nontrivial B
    # (keeps both v7x TensorCores busy), capped at MAX_TB. For B < 8 use a
    # full-extent block (allowed even when not a multiple of 8).
    if B < 8:
        tb = B
    else:
        tb = min(MAX_TB, _round_up(pl.cdiv(B, 2), 8))
    grid = (pl.cdiv(B, tb),)

    out = pl.pallas_call(
        encoder_kernel,
        out_shape=jax.ShapeDtypeStruct((B, HEAD_DIM), jnp.float32),
        grid=grid,
        in_specs=[
            pl.BlockSpec((tb, INPUT_DIM), lambda i: (i, 0)),          # x tile (f32)
            pl.BlockSpec((INPUT_DIM, HIDDEN_PAD), lambda i: (0, 0)),  # W1 bf16 (resident)
            pl.BlockSpec((1, HIDDEN_PAD), lambda i: (0, 0)),          # b1 f32 (resident)
            pl.BlockSpec((HIDDEN_PAD, HEAD_DIM), lambda i: (0, 0)),   # W_heads bf16 (resident)
            pl.BlockSpec((1, HEAD_DIM), lambda i: (0, 0)),            # b_heads f32 (resident)
        ],
        out_specs=pl.BlockSpec((tb, HEAD_DIM), lambda i: (i, 0)),
        compiler_params=pltpu.CompilerParams(
            dimension_semantics=("parallel",)),
    )(x, w1_bf, b1, wh_bf, bh)

    mu = out[:, :LATENT_DIM]
    sigma = out[:, LATENT_DIM:]
    return mu, sigma


def init_params(key):
    """Deterministic init mimicking nn.Linear's U(-1/sqrt(fan_in), 1/sqrt(fan_in)).
    Weights are stored transposed: [in_features, out_features]."""
    ks = jax.random.split(key, 6)

    def linear(kw, kb, fan_in, fan_out):
        bound = 1.0 / jnp.sqrt(fan_in)
        w = jax.random.uniform(kw, (fan_in, fan_out), jnp.float32, -bound, bound)
        b = jax.random.uniform(kb, (1, fan_out), jnp.float32, -bound, bound)
        return w, b

    w1, b1 = linear(ks[0], ks[1], INPUT_DIM, HIDDEN_DIM)
    wmu, bmu = linear(ks[2], ks[3], HIDDEN_DIM, LATENT_DIM)
    wlv, blv = linear(ks[4], ks[5], HIDDEN_DIM, LATENT_DIM)
    return (w1, b1, wmu, bmu, wlv, blv)


def pack_params(params):
    """Convert torch-layout params into the fused / padded / bf16 kernel layout.

    Padding is exactly zero, so results are unchanged (up to the bf16 cast):
      * W1:       [784, 200] -> [784, 256] bf16 (extra columns = 0)
      * b1:       [1, 200]   -> [1, 256]   f32  (extra columns = 0)
      * W_heads:  concat([Wmu, Wlv], axis=1) padded on rows -> [256, 40] bf16
      * b_heads:  concat([bmu, blv], axis=1) -> [1, 40] f32
    """
    w1, b1, wmu, bmu, wlv, blv = params
    pad_h = HIDDEN_PAD - HIDDEN_DIM
    w1_p = jnp.pad(w1, ((0, 0), (0, pad_h))).astype(jnp.bfloat16)
    b1_p = jnp.pad(b1, ((0, 0), (0, pad_h)))
    wh = jnp.pad(jnp.concatenate([wmu, wlv], axis=1),
                 ((0, pad_h), (0, 0))).astype(jnp.bfloat16)
    bh = jnp.concatenate([bmu, blv], axis=1)
    return (w1_p, b1_p, wh, bh)


def reference_forward(x, params):
    """Plain-JAX reference (f32) for correctness checking."""
    w1, b1, wmu, bmu, wlv, blv = params
    h = jnp.maximum(x @ w1 + b1, 0.0)
    mu = h @ wmu + bmu
    logvar = h @ wlv + blv
    return mu, jnp.exp(0.5 * logvar)


if __name__ == "__main__":
    key = jax.random.PRNGKey(0)
    k_param, k_x = jax.random.split(key)

    params = init_params(k_param)
    kernel_params = pack_params(params)

    # B=10 exercises a 2-step grid (tb=8) with a partial last tile (rows 8..9).
    B = 10
    x = jax.random.normal(k_x, (B, INPUT_DIM), jnp.float32)

    mu, sigma = encoder_forward(x, kernel_params)
    jax.block_until_ready((mu, sigma))

    mu_ref, sigma_ref = reference_forward(x, params)
    assert mu.shape == (B, LATENT_DIM) and sigma.shape == (B, LATENT_DIM)
    # bf16 matmul inputs -> loosen tolerance vs. the f32 reference.
    assert jnp.allclose(mu, mu_ref, atol=2e-2, rtol=2e-2)
    assert jnp.allclose(sigma, sigma_ref, atol=2e-2, rtol=2e-2)

    print("KERNEL_OK")
</pallas_src>

<mosaic_0001>
module attributes {stable_mosaic.version = 11 : i64} {
  func.func @encoder_kernel(%arg0: i32, %arg1: memref<8x784xf32, #tpu.memory_space<vmem>>, %arg2: memref<784x256xbf16, #tpu.memory_space<vmem>>, %arg3: memref<1x256xf32, #tpu.memory_space<vmem>>, %arg4: memref<256x40xbf16, #tpu.memory_space<vmem>>, %arg5: memref<1x40xf32, #tpu.memory_space<vmem>>, %arg6: memref<8x40xf32, #tpu.memory_space<vmem>>) attributes {dimension_semantics = [#tpu.dimension_semantics<parallel>], iteration_bounds = array<i64: 2>, scalar_prefetch = 0 : i64, scratch_operands = 0 : i64, tpu.core_type = #tpu.core_type<tc>, window_params = [{transform_indices = @transform_0, window_bounds = array<i64: 8, 784>}, {pipeline_mode = #tpu.pipeline_mode<synchronous>, transform_indices = @transform_1, window_bounds = array<i64: 784, 256>}, {pipeline_mode = #tpu.pipeline_mode<synchronous>, transform_indices = @transform_2, window_bounds = array<i64: 1, 256>}, {pipeline_mode = #tpu.pipeline_mode<synchronous>, transform_indices = @transform_3, window_bounds = array<i64: 256, 40>}, {pipeline_mode = #tpu.pipeline_mode<synchronous>, transform_indices = @transform_4, window_bounds = array<i64: 1, 40>}, {transform_indices = @transform_5, window_bounds = array<i64: 8, 40>}]} {
    %c0 = arith.constant 0 : index
    %c0_0 = arith.constant 0 : index
    %0 = vector.load %arg1[%c0, %c0_0] : memref<8x784xf32, #tpu.memory_space<vmem>>, vector<8x784xf32>
    %1 = arith.truncf %0 : vector<8x784xf32> to vector<8x784xbf16>
    %c0_1 = arith.constant 0 : index
    %c0_2 = arith.constant 0 : index
    %2 = vector.load %arg2[%c0_1, %c0_2] : memref<784x256xbf16, #tpu.memory_space<vmem>>, vector<784x256xbf16>
    %cst = arith.constant dense<0.000000e+00> : vector<8x256xf32>
    %3 = tpu.matmul %1, %2, %cst {dimension_numbers = #tpu.dot_dimension_numbers<[1], [0], [0], [1], [0, 0, 1, 1], [], []>} : vector<8x784xbf16>, vector<784x256xbf16>, vector<8x256xf32> -> vector<8x256xf32>
    %c0_3 = arith.constant 0 : index
    %c0_4 = arith.constant 0 : index
    %4 = vector.load %arg3[%c0_3, %c0_4] : memref<1x256xf32, #tpu.memory_space<vmem>>, vector<1x256xf32>
    %5 = vector.broadcast %4 : vector<1x256xf32> to vector<8x256xf32>
    %6 = arith.addf %3, %5 : vector<8x256xf32>
    %cst_5 = arith.constant 0.000000e+00 : f32
    %7 = vector.broadcast %cst_5 : f32 to vector<8x256xf32>
    %8 = arith.maximumf %6, %7 : vector<8x256xf32>
    %9 = arith.truncf %8 : vector<8x256xf32> to vector<8x256xbf16>
    %c0_6 = arith.constant 0 : index
    %c0_7 = arith.constant 0 : index
    %10 = vector.load %arg4[%c0_6, %c0_7] : memref<256x40xbf16, #tpu.memory_space<vmem>>, vector<256x40xbf16>
    %cst_8 = arith.constant dense<0.000000e+00> : vector<8x40xf32>
    %11 = tpu.matmul %9, %10, %cst_8 {dimension_numbers = #tpu.dot_dimension_numbers<[1], [0], [0], [1], [0, 0, 1, 1], [], []>} : vector<8x256xbf16>, vector<256x40xbf16>, vector<8x40xf32> -> vector<8x40xf32>
    %c0_9 = arith.constant 0 : index
    %c0_10 = arith.constant 0 : index
    %12 = vector.load %arg5[%c0_9, %c0_10] : memref<1x40xf32, #tpu.memory_space<vmem>>, vector<1x40xf32>
    %13 = vector.broadcast %12 : vector<1x40xf32> to vector<8x40xf32>
    %14 = arith.addf %11, %13 : vector<8x40xf32>
    %15 = tpu.iota {dimensions = array<i32: 1>} : vector<8x40xi32>
    %c20_i32 = arith.constant 20 : i32
    %16 = vector.broadcast %c20_i32 : i32 to vector<8x40xi32>
    %17 = arith.cmpi slt, %15, %16 : vector<8x40xi32>
    %cst_11 = arith.constant 5.000000e-01 : f32
    %18 = vector.broadcast %cst_11 : f32 to vector<8x40xf32>
    %19 = arith.mulf %18, %14 : vector<8x40xf32>
    %20 = math.exp %19 : vector<8x40xf32>
    %21 = arith.select %17, %14, %20 : vector<8x40xi1>, vector<8x40xf32>
    %c0_12 = arith.constant 0 : index
    %c0_13 = arith.constant 0 : index
    %22 = vector.load %arg6[%c0_12, %c0_13] : memref<8x40xf32, #tpu.memory_space<vmem>>, vector<8x40xf32>
    tpu.vector_store %arg6[%c0_12, %c0_13], %21 {strides = array<i32>} : memref<8x40xf32, #tpu.memory_space<vmem>>, vector<8x40xf32>,
    return
  }
  func.func @transform_0(%arg0: i32) -> (i32, i32) {
    %c0_i32 = arith.constant 0 : i32
    %c0_i32_0 = arith.constant 0 : i32
    return %arg0, %c0_i32 : i32, i32
  }
  func.func @transform_1(%arg0: i32) -> (i32, i32) {
    %c0_i32 = arith.constant 0 : i32
    %c0_i32_0 = arith.constant 0 : i32
    %c0_i32_1 = arith.constant 0 : i32
    return %c0_i32, %c0_i32_0 : i32, i32
  }
  func.func @transform_2(%arg0: i32) -> (i32, i32) {
    %c0_i32 = arith.constant 0 : i32
    %c0_i32_0 = arith.constant 0 : i32
    %c0_i32_1 = arith.constant 0 : i32
    return %c0_i32, %c0_i32_0 : i32, i32
  }
  func.func @transform_3(%arg0: i32) -> (i32, i32) {
    %c0_i32 = arith.constant 0 : i32
    %c0_i32_0 = arith.constant 0 : i32
    %c0_i32_1 = arith.constant 0 : i32
    return %c0_i32, %c0_i32_0 : i32, i32
  }
  func.func @transform_4(%arg0: i32) -> (i32, i32) {
    %c0_i32 = arith.constant 0 : i32
    %c0_i32_0 = arith.constant 0 : i32
    %c0_i32_1 = arith.constant 0 : i32
    return %c0_i32, %c0_i32_0 : i32, i32
  }
  func.func @transform_5(%arg0: i32) -> (i32, i32) {
    %c0_i32 = arith.constant 0 : i32
    %c0_i32_0 = arith.constant 0 : i32
    return %arg0, %c0_i32 : i32, i32
  }
}

</mosaic_0001>

<llo_original>
// kernel: tpu_custom_call.1
$region0: #{tpu_custom_call.1}
  #allocation0 [shape = 'u32[]', space=smem, size = 0x4, offset = 0x4, fixed_abs, tag = 'smem constant byte address 0x4 - core index']
  #allocation1 [shape = 'u32[144,128]{1,0:T(1,128)}', space=vmem, size = 0x12000, scoped, tag = 'internal scratch']
  %s0 = inlined_call_operand.vmem [shape: f32[10,784], index: 0, kind: input, shape index: {}]
  %s1 = inlined_call_operand.hbm [shape: bf16[784,256], index: 1, kind: input, shape index: {}]
  %s2 = inlined_call_operand.vmem [shape: f32[1,256], index: 2, kind: input, shape index: {}]
  %s3 = inlined_call_operand.vmem [shape: bf16[256,40], index: 3, kind: input, shape index: {}]
  %s4 = inlined_call_operand.vmem [shape: f32[1,40], index: 4, kind: input, shape index: {}]
  %s5 = inlined_call_operand.hbm [shape: f32[10,40], index: 5, kind: output, shape index: {}]
  %s6 = sld [smem:[#allocation0]]
  $region57: #{tpu_custom_call.1} parent=0
    _
  %s8 = ssub.s32 1, %s6
  %s9 = scalar_select 0, %s8, %s6
  $region1: #{tpu_custom_call.1} parent=0
    #allocation2 [shape = 'u8[401408]{0}', space=vmem, size = 0x62000, scoped, tag = 'input window, operand 1, single buffered']
    #allocation3 [shape = 's32[2]{0}', space=sflag, size = 0x8, scoped, tag = 'scoped memory for tpu_custom_call.1']
    #allocation4 [shape = 's32[2]{0}', space=sflag, size = 0x8, scoped, tag = 'scoped memory for tpu_custom_call.1']
    #allocation5 [shape = 'u8[8192]{0}', space=vmem, size = 0x2000, scoped, tag = 'output window, operand 0']
    %10 = vsyncpa [#allocation3], 0
    %11 = vsyncpa [#allocation4], 0
    %s12 = scalar_lea.sflag [#allocation4], 1
    %13 = vsyncpa %s12, 0
    loop: start=0, step=1, limit=4
    $region2: #{tpu_custom_call.1} parent=1 // loop_pre_header
      _
    $region3: #{tpu_custom_call.1} parent=1 // loop_header
      %s15 = sphi 0, %s19
      %p16 = scmp.ge.s32.totalorder %s15, 4
      %s25 = sphi 0, %s27
      %s28 = sphi 0, %s25
      %s29 = sphi 0, %s28
      %s45 = sphi 0, %s29
      %s49 = sphi 0, %s49
      %s51 = sphi 0, %s49
      %s52 = sphi 0, %s51
      %s66 = sphi 0, %s52
      %s70 = sphi 0, %s70
      %s72 = sphi 0, %s70
      %s73 = sphi 0, %s72
      %s87 = sphi 0, %s73
      %s91 = sphi 0, %s91
      %s93 = sphi 0, %s91
      %s94 = sphi 0, %s93
      %s108 = sphi 0, %s94
      %s112 = sphi 0, %s112
      %s114 = sphi 0, %s112
      %s115 = sphi 0, %s114
      %s129 = sphi 0, %s115
      %s135 = sphi 0, %s137
      %s138 = sphi 0, %s135
      %s139 = sphi 0, %s138
      %s155 = sphi 0, %s139
    $region4: #{tpu_custom_call.1} parent=1 // loop_header_branch
      %18 = sbr.rel (%p16) target = $region8
    $region5: #{tpu_custom_call.1} parent=1 // loop_body
      %s20 = ssub.s32 %s15, 1
      %s21 = ssub.s32 %s15, 2
      %s22 = sadd.s32 %s15, 1
      %s23 = ssub.s32 %s15, %s22
      %p24 = scmp.eq.s32.totalorder %s23, 0
      %s26 = sadd.s32 %s25, 1
      %s27 = scalar_select %p24, %s25, %s26
      %p30 = pneg %p24
      %p31 = scmp.eq.s32.totalorder %s15, 1
      %p32 = por %p30, %p31
      %p33 = scmp.ne.s32.totalorder %s25, %s28
      %p34 = scmp.eq.s32.totalorder %s15, 0
      %p35 = por %p33, %p34
      %p36 = scmp.ne.s32.totalorder %s25, %s28
      %p37 = scmp.eq.s32.totalorder %s20, 1
      %p38 = por %p36, %p37
      %p39 = scmp.ne.s32.totalorder %s28, %s29
      %p40 = scmp.eq.s32.totalorder %s20, 0
      %p41 = por %p39, %p40
      %p42 = scmp.ne.s32.totalorder %s28, %s29
      %p43 = scmp.eq.s32.totalorder %s21, 1
      %p44 = por %p42, %p43
      %p46 = scmp.ne.s32.totalorder %s29, %s45
      %p47 = scmp.eq.s32.totalorder %s21, 0
      %p48 = por %p46, %p47
      %s50 = sadd.s32 %s49, 1
      %p53 = scmp.eq.s32.totalorder %s15, 1
      %p54 = scmp.ne.s32.totalorder %s49, %s51
      %p55 = scmp.eq.s32.totalorder %s15, 0
      %p56 = por %p54, %p55
      %p57 = scmp.ne.s32.totalorder %s49, %s51
      %p58 = scmp.eq.s32.totalorder %s20, 1
      %p59 = por %p57, %p58
      %p60 = scmp.ne.s32.totalorder %s51, %s52
      %p61 = scmp.eq.s32.totalorder %s20, 0
      %p62 = por %p60, %p61
      %p63 = scmp.ne.s32.totalorder %s51, %s52
      %p64 = scmp.eq.s32.totalorder %s21, 1
      %p65 = por %p63, %p64
      %p67 = scmp.ne.s32.totalorder %s52, %s66
      %p68 = scmp.eq.s32.totalorder %s21, 0
      %p69 = por %p67, %p68
      %s71 = sadd.s32 %s70, 1
      %p74 = scmp.eq.s32.totalorder %s15, 1
      %p75 = scmp.ne.s32.totalorder %s70, %s72
      %p76 = scmp.eq.s32.totalorder %s15, 0
      %p77 = por %p75, %p76
      %p78 = scmp.ne.s32.totalorder %s70, %s72
      %p79 = scmp.eq.s32.totalorder %s20, 1
      %p80 = por %p78, %p79
      %p81 = scmp.ne.s32.totalorder %s72, %s73
      %p82 = scmp.eq.s32.totalorder %s20, 0
      %p83 = por %p81, %p82
      %p84 = scmp.ne.s32.totalorder %s72, %s73
      %p85 = scmp.eq.s32.totalorder %s21, 1
      %p86 = por %p84, %p85
      %p88 = scmp.ne.s32.totalorder %s73, %s87
      %p89 = scmp.eq.s32.totalorder %s21, 0
      %p90 = por %p88, %p89
      %s92 = sadd.s32 %s91, 1
      %p95 = scmp.eq.s32.totalorder %s15, 1
      %p96 = scmp.ne.s32.totalorder %s91, %s93
      %p97 = scmp.eq.s32.totalorder %s15, 0
      %p98 = por %p96, %p97
      %p99 = scmp.ne.s32.totalorder %s91, %s93
      %p100 = scmp.eq.s32.totalorder %s20, 1
      %p101 = por %p99, %p100
      %p102 = scmp.ne.s32.totalorder %s93, %s94
      %p103 = scmp.eq.s32.totalorder %s20, 0
      %p104 = por %p102, %p103
      %p105 = scmp.ne.s32.totalorder %s93, %s94
      %p106 = scmp.eq.s32.totalorder %s21, 1
      %p107 = por %p105, %p106
      %p109 = scmp.ne.s32.totalorder %s94, %s108
      %p110 = scmp.eq.s32.totalorder %s21, 0
      %p111 = por %p109, %p110
      %s113 = sadd.s32 %s112, 1
      %p116 = scmp.eq.s32.totalorder %s15, 1
      %p117 = scmp.ne.s32.totalorder %s112, %s114
      %p118 = scmp.eq.s32.totalorder %s15, 0
      %p119 = por %p117, %p118
      %p120 = scmp.ne.s32.totalorder %s112, %s114
      %p121 = scmp.eq.s32.totalorder %s20, 1
      %p122 = por %p120, %p121
      %p123 = scmp.ne.s32.totalorder %s114, %s115
      %p124 = scmp.eq.s32.totalorder %s20, 0
      %p125 = por %p123, %p124
      %p126 = scmp.ne.s32.totalorder %s114, %s115
      %p127 = scmp.eq.s32.totalorder %s21, 1
      %p128 = por %p126, %p127
      %p130 = scmp.ne.s32.totalorder %s115, %s129
      %p131 = scmp.eq.s32.totalorder %s21, 0
      %p132 = por %p130, %p131
      %s133 = ssub.s32 %s15, %s22
      %p134 = scmp.eq.s32.totalorder %s133, 0
      %s136 = sadd.s32 %s135, 1
      %s137 = scalar_select %p134, %s135, %s136
      %p140 = pneg %p134
      %p141 = scmp.eq.s32.totalorder %s15, 1
      %p142 = por %p140, %p141
      %p143 = scmp.ne.s32.totalorder %s135, %s138
      %p144 = scmp.eq.s32.totalorder %s15, 0
      %p145 = por %p143, %p144
      %p146 = scmp.ne.s32.totalorder %s135, %s138
      %p147 = scmp.eq.s32.totalorder %s20, 1
      %p148 = por %p146, %p147
      %p149 = scmp.ne.s32.totalorder %s138, %s139
      %p150 = scmp.eq.s32.totalorder %s20, 0
      %p151 = por %p149, %p150
      %p152 = scmp.ne.s32.totalorder %s138, %s139
      %p153 = scmp.eq.s32.totalorder %s21, 1
      %p154 = por %p152, %p153
      %p156 = scmp.ne.s32.totalorder %s139, %s155
      %p157 = scmp.eq.s32.totalorder %s21, 0
      %p158 = por %p156, %p157
      %p159 = scmp.le.s32.totalorder 1, %s15
      %p160 = scmp.lt.s32.totalorder %s15, 3
      %p161 = pnand %p159, %p160
      %p162 = pneg %p161
      // Predicated region
      $region9: #{tpu_custom_call.1} parent=5 // pred_check
        _
      $region10: #{tpu_custom_call.1} parent=5 // pred_check_branch
        %164 = sbr.rel (%p161) target = $region12
      $region11: #{tpu_custom_call.1} parent=5 // pred_region
        %s165 = ssub.s32 %s15, 1
        // Predicated region
        $region13: #{tpu_custom_call.1} parent=11 // pred_check
          %p166 = pneg %p62
        $region14: #{tpu_custom_call.1} parent=11 // pred_check_branch
          %168 = sbr.rel (%p166) target = $region16
        $region15: #{tpu_custom_call.1} parent=11 // pred_region
          %s170 = ssub.s32 12544, 12544
          %171 = vsyncadd [#allocation3], %s170
          %s172 = sshll.u32 [#allocation2], 4
          %s173 = int_to_ptr.vmem [resolvable:$true] %s172
          %178 = dma.hbm_to_vmem [thread:$0]  %s1, 12544, %s173, [#allocation3], 128, 128, 8
        $region16: #{tpu_custom_call.1} parent=11 // pred_fallthru
          _
        // Predicated region
        $region17: #{tpu_custom_call.1} parent=11 // pred_check
          %p179 = pneg %p83
        $region18: #{tpu_custom_call.1} parent=11 // pred_check_branch
          %181 = sbr.rel (%p179) target = $region20
        $region19: #{tpu_custom_call.1} parent=11 // pred_region
          _
        $region20: #{tpu_custom_call.1} parent=11 // pred_fallthru
          _
        // Predicated region
        $region21: #{tpu_custom_call.1} parent=11 // pred_check
          %p182 = pneg %p104
        $region22: #{tpu_custom_call.1} parent=11 // pred_check_branch
          %184 = sbr.rel (%p182) target = $region24
        $region23: #{tpu_custom_call.1} parent=11 // pred_region
          _
        $region24: #{tpu_custom_call.1} parent=11 // pred_fallthru
          _
        // Predicated region
        $region25: #{tpu_custom_call.1} parent=11 // pred_check
          %p185 = pneg %p125
        $region26: #{tpu_custom_call.1} parent=11 // pred_check_branch
          %187 = sbr.rel (%p185) target = $region28
        $region27: #{tpu_custom_call.1} parent=11 // pred_region
          _
        $region28: #{tpu_custom_call.1} parent=11 // pred_fallthru
          _
      $region12: #{tpu_custom_call.1} parent=5 // pred_fallthru
        _
      %p188 = scmp.lt.s32.totalorder %s15, 2
      // Predicated region
      $region29: #{tpu_custom_call.1} parent=5 // pred_check
        %p189 = pneg %p188
      $region30: #{tpu_custom_call.1} parent=5 // pred_check_branch
        %191 = sbr.rel (%p189) target = $region32
      $region31: #{tpu_custom_call.1} parent=5 // pred_region
        // Predicated region
        $region33: #{tpu_custom_call.1} parent=31 // pred_check
          %p192 = pneg %p35
        $region34: #{tpu_custom_call.1} parent=31 // pred_check_branch
          %194 = sbr.rel (%p192) target = $region36
        $region35: #{tpu_custom_call.1} parent=31 // pred_region
          %p195 = scmp.lt.s32.totalorder %s15, 1
          %s196 = scalar_select %p195, %s15, 1
          %s197 = smul.addr %s196, 7
          %s198 = smul.addr %s197, 8
          %s199 = scalar_lea.vmem %s0, %s198
        $region36: #{tpu_custom_call.1} parent=31 // pred_fallthru
          _
      $region32: #{tpu_custom_call.1} parent=5 // pred_fallthru
        _
      %p200 = scmp.le.s32.totalorder 1, %s15
      %p201 = scmp.lt.s32.totalorder %s15, 3
      %p202 = pnand %p200, %p201
      %p203 = pneg %p202
      // Predicated region
      $region37: #{tpu_custom_call.1} parent=5 // pred_check
        _
      $region38: #{tpu_custom_call.1} parent=5 // pred_check_branch
        %205 = sbr.rel (%p202) target = $region40
      $region39: #{tpu_custom_call.1} parent=5 // pred_region
        %s206 = ssub.s32 %s15, 1
        // Predicated region
        $region41: #{tpu_custom_call.1} parent=39 // pred_check
          %p207 = pneg %p62
        $region42: #{tpu_custom_call.1} parent=39 // pred_check_branch
          %209 = sbr.rel (%p207) target = $region44
        $region43: #{tpu_custom_call.1} parent=39 // pred_region
          %210 = dma.done [#allocation3], 12544
        $region44: #{tpu_custom_call.1} parent=39 // pred_fallthru
          _
        %p211 = scmp.lt.s32.totalorder %s20, 1
        %s212 = scalar_select %p211, %s20, 1
        %s213 = smul.addr %s212, 7
        %s214 = smul.addr %s213, 8
        %s215 = scalar_lea.vmem %s0, %s214
        %p216 = pneg %p41
        %p217 = pneg %p38
        %p218 = pneg %p62
        %p219 = pneg %p59
        %p220 = pneg %p83
        %p221 = pneg %p80
        %p222 = pneg %p104
        %p223 = pneg %p101
        %p224 = pneg %p125
        %p225 = pneg %p122
        %p226 = pneg %p151
        %p227 = pneg %p148
        %s228 = sand.u32 %s138, 1
        %s229 = scalar_lea.sflag [#allocation4], %s228
        %s230 = sand.u32 %s138, 1
        %s231 = smul.addr %s230, 8
        %s232 = scalar_lea.vmem [#allocation5], %s231
        %p233 = scmp.lt.s32.totalorder %s20, 1
        %s234 = scalar_select %p233, %s20, 1
        %s235 = smul.addr %s234, 7
        %s236 = smul.addr %s235, 8
        %s237 = scalar_lea.vmem %s0, %s236
        %v239 = vld [vmem:[%s237] sm:$0xff]
        %v240 = vld [vmem:[%s237 + $0x8] sm:$0xff]
        %v241 = vld [vmem:[%s237 + $0x10] sm:$0xff]
        %v242 = vld [vmem:[%s237 + $0x18] sm:$0xff]
        %v243 = vld [vmem:[%s237 + $0x20] sm:$0xff]
        %v244 = vld [vmem:[%s237 + $0x28] sm:$0xff]
        %v245 = vld [vmem:[%s237 + $0x30] sm:$0xff]
        %v246 = vpack.c.bf16 %v239, %v239
        %v247 = vpack.c.bf16 %v240, %v240
        %v248 = vpack.c.bf16 %v241, %v241
        %v249 = vpack.c.bf16 %v242, %v242
        %v250 = vpack.c.bf16 %v243, %v243
        %v251 = vpack.c.bf16 %v244, %v244
        %v252 = vpack.c.bf16 %v245, %v245
        %v253 = vld [vmem:[#allocation2] sm:$0xff]
        %v254 = vld [vmem:[#allocation2 + $0x8] sm:$0xff]
        %v255 = vld [vmem:[#allocation2 + $0x10] sm:$0xff]
        %v256 = vld [vmem:[#allocation2 + $0x18] sm:$0xff]
        %v257 = vld [vmem:[#allocation2 + $0x20] sm:$0xff]
        %v258 = vld [vmem:[#allocation2 + $0x28] sm:$0xff]
        %v259 = vld [vmem:[#allocation2 + $0x30] sm:$0xff]
        %v260 = vld [vmem:[#allocation2 + $0x38] sm:$0xff]
        %v261 = vld [vmem:[#allocation2 + $0x40] sm:$0xff]
        %v262 = vld [vmem:[#allocation2 + $0x48] sm:$0xff]
        %v263 = vld [vmem:[#allocation2 + $0x50] sm:$0xff]
        %v264 = vld [vmem:[#allocation2 + $0x58] sm:$0xff]
        %v265 = vld [vmem:[#allocation2 + $0x60] sm:$0xff]
        %v266 = vld [vmem:[#allocation2 + $0x68] sm:$0xff]
        %v267 = vld [vmem:[#allocation2 + $0x70] sm:$0xff]
        %v268 = vld [vmem:[#allocation2 + $0x78] sm:$0xff]
        %v269 = vld [vmem:[#allocation2 + $0x80] sm:$0xff]
        %v270 = vld [vmem:[#allocation2 + $0x88] sm:$0xff]
        %v271 = vld [vmem:[#allocation2 + $0x90] sm:$0xff]
        %v272 = vld [vmem:[#allocation2 + $0x98] sm:$0xff]
        %v273 = vld [vmem:[#allocation2 + $0xa0] sm:$0xff]
        %v274 = vld [vmem:[#allocation2 + $0xa8] sm:$0xff]
        %v275 = vld [vmem:[#allocation2 + $0xb0] sm:$0xff]
        %v276 = vld [vmem:[#allocation2 + $0xb8] sm:$0xff]
        %v277 = vld [vmem:[#allocation2 + $0xc0] sm:$0xff]
        %v278 = vld [vmem:[#allocation2 + $0xc8] sm:$0xff]
        %v279 = vld [vmem:[#allocation2 + $0xd0] sm:$0xff]
        %v280 = vld [vmem:[#allocation2 + $0xd8] sm:$0xff]
        %v281 = vld [vmem:[#allocation2 + $0xe0] sm:$0xff]
        %v282 = vld [vmem:[#allocation2 + $0xe8] sm:$0xff]
        %v283 = vld [vmem:[#allocation2 + $0xf0] sm:$0xff]
        %v284 = vld [vmem:[#allocation2 + $0xf8] sm:$0xff]
        %v285 = vld [vmem:[#allocation2 + $0x100] sm:$0xff]
        %v286 = vld [vmem:[#allocation2 + $0x108] sm:$0xff]
        %v287 = vld [vmem:[#allocation2 + $0x110] sm:$0xff]
        %v288 = vld [vmem:[#allocation2 + $0x118] sm:$0xff]
        %v289 = vld [vmem:[#allocation2 + $0x120] sm:$0xff]
        %v290 = vld [vmem:[#allocation2 + $0x128] sm:$0xff]
        %v291 = vld [vmem:[#allocation2 + $0x130] sm:$0xff]
        %v292 = vld [vmem:[#allocation2 + $0x138] sm:$0xff]
        %v293 = vld [vmem:[#allocation2 + $0x140] sm:$0xff]
        %v294 = vld [vmem:[#allocation2 + $0x148] sm:$0xff]
        %v295 = vld [vmem:[#allocation2 + $0x150] sm:$0xff]
        %v296 = vld [vmem:[#allocation2 + $0x158] sm:$0xff]
        %v297 = vld [vmem:[#allocation2 + $0x160] sm:$0xff]
        %v298 = vld [vmem:[#allocation2 + $0x168] sm:$0xff]
        %v299 = vld [vmem:[#allocation2 + $0x170] sm:$0xff]
        %v300 = vld [vmem:[#allocation2 + $0x178] sm:$0xff]
        %v301 = vld [vmem:[#allocation2 + $0x180] sm:$0xff]
        %v302 = vld [vmem:[#allocation2 + $0x188] sm:$0xff]
        %v303 = vld [vmem:[#allocation2 + $0x190] sm:$0xff]
        %v304 = vld [vmem:[#allocation2 + $0x198] sm:$0xff]
        %v305 = vld [vmem:[#allocation2 + $0x1a0] sm:$0xff]
        %v306 = vld [vmem:[#allocation2 + $0x1a8] sm:$0xff]
        %v307 = vld [vmem:[#allocation2 + $0x1b0] sm:$0xff]
        %v308 = vld [vmem:[#allocation2 + $0x1b8] sm:$0xff]
        %v309 = vld [vmem:[#allocation2 + $0x1c0] sm:$0xff]
        %v310 = vld [vmem:[#allocation2 + $0x1c8] sm:$0xff]
        %v311 = vld [vmem:[#allocation2 + $0x1d0] sm:$0xff]
        %v312 = vld [vmem:[#allocation2 + $0x1d8] sm:$0xff]
        %v313 = vld [vmem:[#allocation2 + $0x1e0] sm:$0xff]
        %v314 = vld [vmem:[#allocation2 + $0x1e8] sm:$0xff]
        %v315 = vld [vmem:[#allocation2 + $0x1f0] sm:$0xff]
        %v316 = vld [vmem:[#allocation2 + $0x1f8] sm:$0xff]
        %v317 = vld [vmem:[#allocation2 + $0x200] sm:$0xff]
        %v318 = vld [vmem:[#allocation2 + $0x208] sm:$0xff]
        %v319 = vld [vmem:[#allocation2 + $0x210] sm:$0xff]
        %v320 = vld [vmem:[#allocation2 + $0x218] sm:$0xff]
        %v321 = vld [vmem:[#allocation2 + $0x220] sm:$0xff]
        %v322 = vld [vmem:[#allocation2 + $0x228] sm:$0xff]
        %v323 = vld [vmem:[#allocation2 + $0x230] sm:$0xff]
        %v324 = vld [vmem:[#allocation2 + $0x238] sm:$0xff]
        %v325 = vld [vmem:[#allocation2 + $0x240] sm:$0xff]
        %v326 = vld [vmem:[#allocation2 + $0x248] sm:$0xff]
        %v327 = vld [vmem:[#allocation2 + $0x250] sm:$0xff]
        %v328 = vld [vmem:[#allocation2 + $0x258] sm:$0xff]
        %v329 = vld [vmem:[#allocation2 + $0x260] sm:$0xff]
        %v330 = vld [vmem:[#allocation2 + $0x268] sm:$0xff]
        %v331 = vld [vmem:[#allocation2 + $0x270] sm:$0xff]
        %v332 = vld [vmem:[#allocation2 + $0x278] sm:$0xff]
        %v333 = vld [vmem:[#allocation2 + $0x280] sm:$0xff]
        %v334 = vld [vmem:[#allocation2 + $0x288] sm:$0xff]
        %v335 = vld [vmem:[#allocation2 + $0x290] sm:$0xff]
        %v336 = vld [vmem:[#allocation2 + $0x298] sm:$0xff]
        %v337 = vld [vmem:[#allocation2 + $0x2a0] sm:$0xff]
        %v338 = vld [vmem:[#allocation2 + $0x2a8] sm:$0xff]
        %v339 = vld [vmem:[#allocation2 + $0x2b0] sm:$0xff]
        %v340 = vld [vmem:[#allocation2 + $0x2b8] sm:$0xff]
        %v341 = vld [vmem:[#allocation2 + $0x2c0] sm:$0xff]
        %v342 = vld [vmem:[#allocation2 + $0x2c8] sm:$0xff]
        %v343 = vld [vmem:[#allocation2 + $0x2d0] sm:$0xff]
        %v344 = vld [vmem:[#allocation2 + $0x2d8] sm:$0xff]
        %v345 = vld [vmem:[#allocation2 + $0x2e0] sm:$0xff]
        %v346 = vld [vmem:[#allocation2 + $0x2e8] sm:$0xff]
        %v347 = vld [vmem:[#allocation2 + $0x2f0] sm:$0xff]
        %v348 = vld [vmem:[#allocation2 + $0x2f8] sm:$0xff]
        %v349 = vld [vmem:[#allocation2 + $0x300] sm:$0xff]
        %v350 = vld [vmem:[#allocation2 + $0x308] sm:$0xff]
        %v351 = vld [vmem:[%s2] sm:$0x3]
        %v353 = vlaneseq
        %v354 = vshrl.u32 %v353, 7
        %v355 = vsub.s32 0, %v354
        %v356 = vrot.slane %v351, %v355
        %v357 = vlaneseq
        %v358 = vshrl.u32 %v357, 7
        %v359 = vsub.s32 1, %v358
        %v360 = vrot.slane %v351, %v359
        %v461 = vunpack.c.l.b16 %v253
        %v462 = vunpack.c.h.b16 %v253
        %v463 = vunpack.c.l.b16 %v254
        %v464 = vunpack.c.h.b16 %v254
        %v465 = vunpack.c.l.b16 %v255
        %v466 = vunpack.c.h.b16 %v255
        %v467 = vunpack.c.l.b16 %v256
        %v468 = vunpack.c.h.b16 %v256
        %v469 = vunpack.c.l.b16 %v257
        %v470 = vunpack.c.h.b16 %v257
        %v471 = vunpack.c.l.b16 %v258
        %v472 = vunpack.c.h.b16 %v258
        %v473 = vunpack.c.l.b16 %v259
        %v474 = vunpack.c.h.b16 %v259
        %v475 = vunpack.c.l.b16 %v260
        %v476 = vunpack.c.h.b16 %v260
        %v477 = vunpack.c.l.b16 %v261
        %v478 = vunpack.c.h.b16 %v261
        %v479 = vunpack.c.l.b16 %v262
        %v480 = vunpack.c.h.b16 %v262
        %v481 = vunpack.c.l.b16 %v263
        %v482 = vunpack.c.h.b16 %v263
        %v483 = vunpack.c.l.b16 %v264
        %v484 = vunpack.c.h.b16 %v264
        %v485 = vunpack.c.l.b16 %v265
        %v486 = vunpack.c.h.b16 %v265
        %v487 = vunpack.c.l.b16 %v266
        %v488 = vunpack.c.h.b16 %v266
        %v489 = vunpack.c.l.b16 %v267
        %v490 = vunpack.c.h.b16 %v267
        %v491 = vunpack.c.l.b16 %v268
        %v492 = vunpack.c.h.b16 %v268
        %v493 = vunpack.c.l.b16 %v269
        %v494 = vunpack.c.h.b16 %v269
        %v495 = vunpack.c.l.b16 %v270
        %v496 = vunpack.c.h.b16 %v270
        %v497 = vunpack.c.l.b16 %v271
        %v498 = vunpack.c.h.b16 %v271
        %v499 = vunpack.c.l.b16 %v272
        %v500 = vunpack.c.h.b16 %v272
        %v501 = vunpack.c.l.b16 %v273
        %v502 = vunpack.c.h.b16 %v273
        %v503 = vunpack.c.l.b16 %v274
        %v504 = vunpack.c.h.b16 %v274
        %v505 = vunpack.c.l.b16 %v275
        %v506 = vunpack.c.h.b16 %v275
        %v507 = vunpack.c.l.b16 %v276
        %v508 = vunpack.c.h.b16 %v276
        %v509 = vunpack.c.l.b16 %v277
        %v510 = vunpack.c.h.b16 %v277
        %v511 = vunpack.c.l.b16 %v278
        %v512 = vunpack.c.h.b16 %v278
        %v513 = vunpack.c.l.b16 %v279
        %v514 = vunpack.c.h.b16 %v279
        %v515 = vunpack.c.l.b16 %v280
        %v516 = vunpack.c.h.b16 %v280
        %v517 = vunpack.c.l.b16 %v281
        %v518 = vunpack.c.h.b16 %v281
        %v519 = vunpack.c.l.b16 %v282
        %v520 = vunpack.c.h.b16 %v282
        %v521 = vunpack.c.l.b16 %v283
        %v522 = vunpack.c.h.b16 %v283
        %v523 = vunpack.c.l.b16 %v284
        %v524 = vunpack.c.h.b16 %v284
        %v525 = vunpack.c.l.b16 %v285
        %v526 = vunpack.c.h.b16 %v285
        %v527 = vunpack.c.l.b16 %v286
        %v528 = vunpack.c.h.b16 %v286
        %v529 = vunpack.c.l.b16 %v287
        %v530 = vunpack.c.h.b16 %v287
        %v531 = vunpack.c.l.b16 %v288
        %v532 = vunpack.c.h.b16 %v288
        %v533 = vunpack.c.l.b16 %v289
        %v534 = vunpack.c.h.b16 %v289
        %v535 = vunpack.c.l.b16 %v290
        %v536 = vunpack.c.h.b16 %v290
        %v537 = vunpack.c.l.b16 %v291
        %v538 = vunpack.c.h.b16 %v291
        %v539 = vunpack.c.l.b16 %v292
        %v540 = vunpack.c.h.b16 %v292
        %v541 = vunpack.c.l.b16 %v293
        %v542 = vunpack.c.h.b16 %v293
        %v543 = vunpack.c.l.b16 %v294
        %v544 = vunpack.c.h.b16 %v294
        %v545 = vunpack.c.l.b16 %v295
        %v546 = vunpack.c.h.b16 %v295
        %v547 = vunpack.c.l.b16 %v296
        %v548 = vunpack.c.h.b16 %v296
        %v549 = vunpack.c.l.b16 %v297
        %v550 = vunpack.c.h.b16 %v297
        %v551 = vunpack.c.l.b16 %v298
        %v552 = vunpack.c.h.b16 %v298
        %v553 = vunpack.c.l.b16 %v299
        %v554 = vunpack.c.h.b16 %v299
        %v555 = vunpack.c.l.b16 %v300
        %v556 = vunpack.c.h.b16 %v300
        %v557 = vunpack.c.l.b16 %v301
        %v558 = vunpack.c.h.b16 %v301
        %v559 = vunpack.c.l.b16 %v302
        %v560 = vunpack.c.h.b16 %v302
        %v561 = vunpack.c.l.b16 %v303
        %v562 = vunpack.c.h.b16 %v303
        %v563 = vunpack.c.l.b16 %v304
        %v564 = vunpack.c.h.b16 %v304
        %v565 = vunpack.c.l.b16 %v305
        %v566 = vunpack.c.h.b16 %v305
        %v567 = vunpack.c.l.b16 %v306
        %v568 = vunpack.c.h.b16 %v306
        %v569 = vunpack.c.l.b16 %v307
        %v570 = vunpack.c.h.b16 %v307
        %v571 = vunpack.c.l.b16 %v308
        %v572 = vunpack.c.h.b16 %v308
        %v573 = vunpack.c.l.b16 %v309
        %v574 = vunpack.c.h.b16 %v309
        %v575 = vunpack.c.l.b16 %v310
        %v576 = vunpack.c.h.b16 %v310
        %v577 = vunpack.c.l.b16 %v311
        %v578 = vunpack.c.h.b16 %v311
        %v579 = vunpack.c.l.b16 %v312
        %v580 = vunpack.c.h.b16 %v312
        %v581 = vunpack.c.l.b16 %v313
        %v582 = vunpack.c.h.b16 %v313
        %v583 = vunpack.c.l.b16 %v314
        %v584 = vunpack.c.h.b16 %v314
        %v585 = vunpack.c.l.b16 %v315
        %v586 = vunpack.c.h.b16 %v315
        %v587 = vunpack.c.l.b16 %v316
        %v588 = vunpack.c.h.b16 %v316
        %v589 = vunpack.c.l.b16 %v317
        %v590 = vunpack.c.h.b16 %v317
        %v591 = vunpack.c.l.b16 %v318
        %v592 = vunpack.c.h.b16 %v318
        %v593 = vunpack.c.l.b16 %v319
        %v594 = vunpack.c.h.b16 %v319
        %v595 = vunpack.c.l.b16 %v320
        %v596 = vunpack.c.h.b16 %v320
        %v597 = vunpack.c.l.b16 %v321
        %v598 = vunpack.c.h.b16 %v321
        %v599 = vunpack.c.l.b16 %v322
        %v600 = vunpack.c.h.b16 %v322
        %v601 = vunpack.c.l.b16 %v323
        %v602 = vunpack.c.h.b16 %v323
        %v603 = vunpack.c.l.b16 %v324
        %v604 = vunpack.c.h.b16 %v324
        %v605 = vunpack.c.l.b16 %v325
        %v606 = vunpack.c.h.b16 %v325
        %v607 = vunpack.c.l.b16 %v326
        %v608 = vunpack.c.h.b16 %v326
        %v609 = vunpack.c.l.b16 %v327
        %v610 = vunpack.c.h.b16 %v327
        %v611 = vunpack.c.l.b16 %v328
        %v612 = vunpack.c.h.b16 %v328
        %v613 = vunpack.c.l.b16 %v329
        %v614 = vunpack.c.h.b16 %v329
        %v615 = vunpack.c.l.b16 %v330
        %v616 = vunpack.c.h.b16 %v330
        %v617 = vunpack.c.l.b16 %v331
        %v618 = vunpack.c.h.b16 %v331
        %v619 = vunpack.c.l.b16 %v332
        %v620 = vunpack.c.h.b16 %v332
        %v621 = vunpack.c.l.b16 %v333
        %v622 = vunpack.c.h.b16 %v333
        %v623 = vunpack.c.l.b16 %v334
        %v624 = vunpack.c.h.b16 %v334
        %v625 = vunpack.c.l.b16 %v335
        %v626 = vunpack.c.h.b16 %v335
        %v627 = vunpack.c.l.b16 %v336
        %v628 = vunpack.c.h.b16 %v336
        %v629 = vunpack.c.l.b16 %v337
        %v630 = vunpack.c.h.b16 %v337
        %v631 = vunpack.c.l.b16 %v338
        %v632 = vunpack.c.h.b16 %v338
        %v633 = vunpack.c.l.b16 %v339
        %v634 = vunpack.c.h.b16 %v339
        %v635 = vunpack.c.l.b16 %v340
        %v636 = vunpack.c.h.b16 %v340
        %v637 = vunpack.c.l.b16 %v341
        %v638 = vunpack.c.h.b16 %v341
        %v639 = vunpack.c.l.b16 %v342
        %v640 = vunpack.c.h.b16 %v342
        %v641 = vunpack.c.l.b16 %v343
        %v642 = vunpack.c.h.b16 %v343
        %v643 = vunpack.c.l.b16 %v344
        %v644 = vunpack.c.h.b16 %v344
        %v645 = vunpack.c.l.b16 %v345
        %v646 = vunpack.c.h.b16 %v345
        %v647 = vunpack.c.l.b16 %v346
        %v648 = vunpack.c.h.b16 %v346
        %v649 = vunpack.c.l.b16 %v347
        %v650 = vunpack.c.h.b16 %v347
        %v651 = vunpack.c.l.b16 %v348
        %v652 = vunpack.c.h.b16 %v348
        %v653 = vunpack.c.l.b16 %v349
        %v654 = vunpack.c.h.b16 %v349
        %v655 = vunpack.c.l.b16 %v350
        %v656 = vunpack.c.h.b16 %v350
        %v657 = vpack.c.b16 %v463, %v461
        %v658 = vpack.c.b16 %v464, %v462
        %v659 = vpack.c.b16 %v467, %v465
        %v660 = vpack.c.b16 %v468, %v466
        %v661 = vpack.c.b16 %v471, %v469
        %v662 = vpack.c.b16 %v472, %v470
        %v663 = vpack.c.b16 %v475, %v473
        %v664 = vpack.c.b16 %v476, %v474
        %v665 = vpack.c.b16 %v479, %v477
        %v666 = vpack.c.b16 %v480, %v478
        %v667 = vpack.c.b16 %v483, %v481
        %v668 = vpack.c.b16 %v484, %v482
        %v669 = vpack.c.b16 %v487, %v485
        %v670 = vpack.c.b16 %v488, %v486
        %v671 = vpack.c.b16 %v491, %v489
        %v672 = vpack.c.b16 %v492, %v490
        %v673 = vpack.c.b16 %v495, %v493
        %v674 = vpack.c.b16 %v496, %v494
        %v675 = vpack.c.b16 %v499, %v497
        %v676 = vpack.c.b16 %v500, %v498
        %v677 = vpack.c.b16 %v503, %v501
        %v678 = vpack.c.b16 %v504, %v502
        %v679 = vpack.c.b16 %v507, %v505
        %v680 = vpack.c.b16 %v508, %v506
        %v681 = vpack.c.b16 %v511, %v509
        %v682 = vpack.c.b16 %v512, %v510
        %v683 = vpack.c.b16 %v515, %v513
        %v684 = vpack.c.b16 %v516, %v514
        %v685 = vpack.c.b16 %v519, %v517
        %v686 = vpack.c.b16 %v520, %v518
        %v687 = vpack.c.b16 %v523, %v521
        %v688 = vpack.c.b16 %v524, %v522
        %v689 = vpack.c.b16 %v527, %v525
        %v690 = vpack.c.b16 %v528, %v526
        %v691 = vpack.c.b16 %v531, %v529
        %v692 = vpack.c.b16 %v532, %v530
        %v693 = vpack.c.b16 %v535, %v533
        %v694 = vpack.c.b16 %v536, %v534
        %v695 = vpack.c.b16 %v539, %v537
        %v696 = vpack.c.b16 %v540, %v538
        %v697 = vpack.c.b16 %v543, %v541
        %v698 = vpack.c.b16 %v544, %v542
        %v699 = vpack.c.b16 %v547, %v545
        %v700 = vpack.c.b16 %v548, %v546
        %v701 = vpack.c.b16 %v551, %v549
        %v702 = vpack.c.b16 %v552, %v550
        %v703 = vpack.c.b16 %v555, %v553
        %v704 = vpack.c.b16 %v556, %v554
        %v705 = vpack.c.b16 %v559, %v557
        %v706 = vpack.c.b16 %v560, %v558
        %v707 = vpack.c.b16 %v563, %v561
        %v708 = vpack.c.b16 %v564, %v562
        %v709 = vpack.c.b16 %v567, %v565
        %v710 = vpack.c.b16 %v568, %v566
        %v711 = vpack.c.b16 %v571, %v569
        %v712 = vpack.c.b16 %v572, %v570
        %v713 = vpack.c.b16 %v575, %v573
        %v714 = vpack.c.b16 %v576, %v574
        %v715 = vpack.c.b16 %v579, %v577
        %v716 = vpack.c.b16 %v580, %v578
        %v717 = vpack.c.b16 %v583, %v581
        %v718 = vpack.c.b16 %v584, %v582
        %v719 = vpack.c.b16 %v587, %v585
        %v720 = vpack.c.b16 %v588, %v586
        %v721 = vpack.c.b16 %v591, %v589
        %v722 = vpack.c.b16 %v592, %v590
        %v723 = vpack.c.b16 %v595, %v593
        %v724 = vpack.c.b16 %v596, %v594
        %v725 = vpack.c.b16 %v599, %v597
        %v726 = vpack.c.b16 %v600, %v598
        %v727 = vpack.c.b16 %v603, %v601
        %v728 = vpack.c.b16 %v604, %v602
        %v729 = vpack.c.b16 %v607, %v605
        %v730 = vpack.c.b16 %v608, %v606
        %v731 = vpack.c.b16 %v611, %v609
        %v732 = vpack.c.b16 %v612, %v610
        %v733 = vpack.c.b16 %v615, %v613
        %v734 = vpack.c.b16 %v616, %v614
        %v735 = vpack.c.b16 %v619, %v617
        %v736 = vpack.c.b16 %v620, %v618
        %v737 = vpack.c.b16 %v623, %v621
        %v738 = vpack.c.b16 %v624, %v622
        %v739 = vpack.c.b16 %v627, %v625
        %v740 = vpack.c.b16 %v628, %v626
        %v741 = vpack.c.b16 %v631, %v629
        %v742 = vpack.c.b16 %v632, %v630
        %v743 = vpack.c.b16 %v635, %v633
        %v744 = vpack.c.b16 %v636, %v634
        %v745 = vpack.c.b16 %v639, %v637
        %v746 = vpack.c.b16 %v640, %v638
        %v747 = vpack.c.b16 %v643, %v641
        %v748 = vpack.c.b16 %v644, %v642
        %v749 = vpack.c.b16 %v647, %v645
        %v750 = vpack.c.b16 %v648, %v646
        %v751 = vpack.c.b16 %v651, %v649
        %v752 = vpack.c.b16 %v652, %v650
        %v753 = vpack.c.b16 %v655, %v653
        %v754 = vpack.c.b16 %v656, %v654
        %vm853 = vcmask 130048
        %v855 = vsel %vm853, %v252, 0
        %857 = vmatprep.subr.bf16.mxu0 %v658
        %858 = vmatpush1.bf16.msra.mxu0 %v657
        %859 = vmatprep.subr.bf16.mxu0 %v660
        %860 = vmatpush1.bf16.msra.mxu0 %v659
        %861 = vmatprep.subr.bf16.mxu0 %v662
        %862 = vmatpush1.bf16.msra.mxu0 %v661
        %863 = vmatprep.subr.bf16.mxu0 %v664
        %864 = vmatpush1.bf16.msra.mxu0 %v663
        %865 = vmatprep.subr.bf16.mxu0 %v666
        %866 = vmatpush1.bf16.msra.mxu0 %v665
        %867 = vmatprep.subr.bf16.mxu0 %v668
        %868 = vmatpush1.bf16.msra.mxu0 %v667
        %869 = vmatprep.subr.bf16.mxu0 %v670
        %870 = vmatpush1.bf16.msra.mxu0 %v669
        %871 = vmatprep.subr.bf16.mxu0 %v672
        %872 = vmatpush1.bf16.msra.mxu0 %v671
        %873 = vmatprep.subr.bf16.mxu0 %v674
        %874 = vmatpush1.bf16.msra.mxu0 %v673
        %875 = vmatprep.subr.bf16.mxu0 %v676
        %876 = vmatpush1.bf16.msra.mxu0 %v675
        %877 = vmatprep.subr.bf16.mxu0 %v678
        %878 = vmatpush1.bf16.msra.mxu0 %v677
        %879 = vmatprep.subr.bf16.mxu0 %v680
        %880 = vmatpush1.bf16.msra.mxu0 %v679
        %881 = vmatprep.subr.bf16.mxu0 %v682
        %882 = vmatpush1.bf16.msra.mxu0 %v681
        %883 = vmatprep.subr.bf16.mxu0 %v684
        %884 = vmatpush1.bf16.msra.mxu0 %v683
        %885 = vmatprep.subr.bf16.mxu0 %v686
        %886 = vmatpush1.bf16.msra.mxu0 %v685
        %887 = vmatprep.subr.bf16.mxu0 %v688
        %888 = vmatpush1.bf16.msra.mxu0 %v687
        %889 = vmatprep.mubr.bf16.mxu0 %v247
        %890 = vmatmul.mubr.bf16.gmra.mrb[0].mxu0 %v246
        %v891 = vpop.f32.mrb[0].mxu0
        %v892 = vadd.f32 %v356, %v891
        %v893 = vpop.f32.mrb[0].mxu0
        %v894 = vadd.f32 %v360, %v893
        %v895 = vpop.f32.mrb[0].mxu0
        %v896 = vpop.f32.mrb[0].mxu0
        %897 = vdwg.mxu0
        %898 = vmatprep.subr.bf16.mxu0 %v690
        %899 = vmatpush1.bf16.msra.mxu0 %v689
        %900 = vmatprep.subr.bf16.mxu0 %v692
        %901 = vmatpush1.bf16.msra.mxu0 %v691
        %902 = vmatprep.subr.bf16.mxu0 %v694
        %903 = vmatpush1.bf16.msra.mxu0 %v693
        %904 = vmatprep.subr.bf16.mxu0 %v696
        %905 = vmatpush1.bf16.msra.mxu0 %v695
        %906 = vmatprep.subr.bf16.mxu0 %v698
        %907 = vmatpush1.bf16.msra.mxu0 %v697
        %908 = vmatprep.subr.bf16.mxu0 %v700
        %909 = vmatpush1.bf16.msra.mxu0 %v699
        %910 = vmatprep.subr.bf16.mxu0 %v702
        %911 = vmatpush1.bf16.msra.mxu0 %v701
        %912 = vmatprep.subr.bf16.mxu0 %v704
        %913 = vmatpush1.bf16.msra.mxu0 %v703
        %914 = vmatprep.subr.bf16.mxu0 %v706
        %915 = vmatpush1.bf16.msra.mxu0 %v705
        %916 = vmatprep.subr.bf16.mxu0 %v708
        %917 = vmatpush1.bf16.msra.mxu0 %v707
        %918 = vmatprep.subr.bf16.mxu0 %v710
        %919 = vmatpush1.bf16.msra.mxu0 %v709
        %920 = vmatprep.subr.bf16.mxu0 %v712
        %921 = vmatpush1.bf16.msra.mxu0 %v711
        %922 = vmatprep.subr.bf16.mxu0 %v714
        %923 = vmatpush1.bf16.msra.mxu0 %v713
        %924 = vmatprep.subr.bf16.mxu0 %v716
        %925 = vmatpush1.bf16.msra.mxu0 %v715
        %926 = vmatprep.subr.bf16.mxu0 %v718
        %927 = vmatpush1.bf16.msra.mxu0 %v717
        %928 = vmatprep.subr.bf16.mxu0 %v720
        %929 = vmatpush1.bf16.msra.mxu0 %v719
        %930 = vmatprep.mubr.bf16.mxu0 %v249
        %931 = vmatmul.mubr.bf16.gmra.mrb[0].mxu0 %v248
        %v932 = vpop.f32.mrb[0].mxu0
        %v933 = vadd.f32 %v892, %v932
        %v934 = vpop.f32.mrb[0].mxu0
        %v935 = vadd.f32 %v894, %v934
        %v936 = vpop.f32.mrb[0].mxu0
        %v937 = vpop.f32.mrb[0].mxu0
        %938 = vdwg.mxu0
        %939 = vmatprep.subr.bf16.mxu0 %v722
        %940 = vmatpush1.bf16.msra.mxu0 %v721
        %941 = vmatprep.subr.bf16.mxu0 %v724
        %942 = vmatpush1.bf16.msra.mxu0 %v723
        %943 = vmatprep.subr.bf16.mxu0 %v726
        %944 = vmatpush1.bf16.msra.mxu0 %v725
        %945 = vmatprep.subr.bf16.mxu0 %v728
        %946 = vmatpush1.bf16.msra.mxu0 %v727
        %947 = vmatprep.subr.bf16.mxu0 %v730
        %948 = vmatpush1.bf16.msra.mxu0 %v729
        %949 = vmatprep.subr.bf16.mxu0 %v732
        %950 = vmatpush1.bf16.msra.mxu0 %v731
        %951 = vmatprep.subr.bf16.mxu0 %v734
        %952 = vmatpush1.bf16.msra.mxu0 %v733
        %953 = vmatprep.subr.bf16.mxu0 %v736
        %954 = vmatpush1.bf16.msra.mxu0 %v735
        %955 = vmatprep.subr.bf16.mxu0 %v738
        %956 = vmatpush1.bf16.msra.mxu0 %v737
        %957 = vmatprep.subr.bf16.mxu0 %v740
        %958 = vmatpush1.bf16.msra.mxu0 %v739
        %959 = vmatprep.subr.bf16.mxu0 %v742
        %960 = vmatpush1.bf16.msra.mxu0 %v741
        %961 = vmatprep.subr.bf16.mxu0 %v744
        %962 = vmatpush1.bf16.msra.mxu0 %v743
        %963 = vmatprep.subr.bf16.mxu0 %v746
        %964 = vmatpush1.bf16.msra.mxu0 %v745
        %965 = vmatprep.subr.bf16.mxu0 %v748
        %966 = vmatpush1.bf16.msra.mxu0 %v747
        %967 = vmatprep.subr.bf16.mxu0 %v750
        %968 = vmatpush1.bf16.msra.mxu0 %v749
        %969 = vmatprep.subr.bf16.mxu0 %v752
        %970 = vmatpush1.bf16.msra.mxu0 %v751
        %971 = vmatprep.mubr.bf16.mxu0 %v251
        %972 = vmatmul.mubr.bf16.gmra.mrb[0].mxu0 %v250
        %v973 = vpop.f32.mrb[0].mxu0
        %v974 = vadd.f32 %v933, %v973
        %v975 = vpop.f32.mrb[0].mxu0
        %v976 = vadd.f32 %v935, %v975
        %v977 = vpop.f32.mrb[0].mxu0
        %v978 = vpop.f32.mrb[0].mxu0
        %979 = vdwg.mxu0
        %980 = vmatprep.subr.bf16.mxu0 %v754
        %981 = vmatpush1.bf16.msra.mxu0 %v753
        %982 = vmatprep.subr.bf16.mxu0 0
        %983 = vmatpush1.bf16.msra.mxu0 0
        %984 = vmatprep.subr.bf16.mxu0 0
        %985 = vmatpush1.bf16.msra.mxu0 0
        %986 = vmatprep.subr.bf16.mxu0 0
        %987 = vmatpush1.bf16.msra.mxu0 0
        %988 = vmatprep.subr.bf16.mxu0 0
        %989 = vmatpush1.bf16.msra.mxu0 0
        %990 = vmatprep.subr.bf16.mxu0 0
        %991 = vmatpush1.bf16.msra.mxu0 0
        %992 = vmatprep.subr.bf16.mxu0 0
        %993 = vmatpush1.bf16.msra.mxu0 0
        %994 = vmatprep.subr.bf16.mxu0 0
        %995 = vmatpush1.bf16.msra.mxu0 0
        %996 = vmatprep.subr.bf16.mxu0 0
        %997 = vmatpush1.bf16.msra.mxu0 0
        %998 = vmatprep.subr.bf16.mxu0 0
        %999 = vmatpush1.bf16.msra.mxu0 0
        %1000 = vmatprep.subr.bf16.mxu0 0
        %1001 = vmatpush1.bf16.msra.mxu0 0
        %1002 = vmatprep.subr.bf16.mxu0 0
        %1003 = vmatpush1.bf16.msra.mxu0 0
        %1004 = vmatprep.subr.bf16.mxu0 0
        %1005 = vmatpush1.bf16.msra.mxu0 0
        %1006 = vmatprep.subr.bf16.mxu0 0
        %1007 = vmatpush1.bf16.msra.mxu0 0
        %1008 = vmatprep.subr.bf16.mxu0 0
        %1009 = vmatpush1.bf16.msra.mxu0 0
        %1010 = vmatprep.subr.bf16.mxu0 0
        %1011 = vmatpush1.bf16.msra.mxu0 0
        %1012 = vmatprep.mubr.bf16.mxu0 0
        %1013 = vmatmul.mubr.bf16.gmra.mrb[0].mxu0 %v855
        %v1014 = vpop.f32.mrb[0].mxu0
        %v1015 = vadd.f32 %v974, %v1014
        %v1016 = vpop.f32.mrb[0].mxu0
        %v1017 = vadd.f32 %v976, %v1016
        %v1018 = vpop.f32.mrb[0].mxu0
        %v1019 = vpop.f32.mrb[0].mxu0
        %1020 = vdwg.mxu0
        %v1021 = vmax.f32 %v1015, 0.0
        %v1022 = vmax.f32 %v1017, 0.0
        %v1023 = vpack.c.bf16 %v1021, %v1021
        %v1024 = vpack.c.bf16 %v1022, %v1022
        %v1025 = vld [vmem:[%s3] sm:$0xf]
        %v1026 = vld [vmem:[%s3 + $0x4] sm:$0xf]
        %v1027 = vld [vmem:[%s3 + $0x8] sm:$0xf]
        %v1028 = vld [vmem:[%s3 + $0xc] sm:$0xf]
        %v1029 = vld [vmem:[%s3 + $0x10] sm:$0xf]
        %v1030 = vld [vmem:[%s3 + $0x14] sm:$0xf]
        %v1031 = vld [vmem:[%s3 + $0x18] sm:$0xf]
        %v1032 = vld [vmem:[%s3 + $0x1c] sm:$0xf]
        %v1033 = vld [vmem:[%s3 + $0x20] sm:$0xf]
        %v1034 = vld [vmem:[%s3 + $0x24] sm:$0xf]
        %v1035 = vld [vmem:[%s3 + $0x28] sm:$0xf]
        %v1036 = vld [vmem:[%s3 + $0x2c] sm:$0xf]
        %v1037 = vld [vmem:[%s3 + $0x30] sm:$0xf]
        %v1038 = vld [vmem:[%s3 + $0x34] sm:$0xf]
        %v1039 = vld [vmem:[%s3 + $0x38] sm:$0xf]
        %v1040 = vld [vmem:[%s3 + $0x3c] sm:$0xf]
        %v1041 = vld [vmem:[%s3 + $0x40] sm:$0xf]
        %v1042 = vld [vmem:[%s3 + $0x44] sm:$0xf]
        %v1043 = vld [vmem:[%s3 + $0x48] sm:$0xf]
        %v1044 = vld [vmem:[%s3 + $0x4c] sm:$0xf]
        %v1045 = vld [vmem:[%s3 + $0x50] sm:$0xf]
        %v1046 = vld [vmem:[%s3 + $0x54] sm:$0xf]
        %v1047 = vld [vmem:[%s3 + $0x58] sm:$0xf]
        %v1048 = vld [vmem:[%s3 + $0x5c] sm:$0xf]
        %v1049 = vld [vmem:[%s3 + $0x60] sm:$0xf]
        %v1050 = vld [vmem:[%s3 + $0x64] sm:$0xf]
        %v1051 = vld [vmem:[%s3 + $0x68] sm:$0xf]
        %v1052 = vld [vmem:[%s3 + $0x6c] sm:$0xf]
        %v1053 = vld [vmem:[%s3 + $0x70] sm:$0xf]
        %v1054 = vld [vmem:[%s3 + $0x74] sm:$0xf]
        %v1055 = vld [vmem:[%s3 + $0x78] sm:$0xf]
        %v1056 = vld [vmem:[%s3 + $0x7c] sm:$0xf]
        %v1057 = vld [vmem:[%s4] sm:$0x1]
        %v1059 = vlaneseq
        %v1060 = vshrl.u32 %v1059, 7
        %v1061 = vsub.s32 0, %v1060
        %v1062 = vrot.slane %v1057, %v1061
        %v1096 = vunpack.c.l.b16 %v1025
        %v1097 = vunpack.c.l.b16 %v1026
        %v1098 = vunpack.c.l.b16 %v1027
        %v1099 = vunpack.c.l.b16 %v1028
        %v1100 = vunpack.c.l.b16 %v1029
        %v1101 = vunpack.c.l.b16 %v1030
        %v1102 = vunpack.c.l.b16 %v1031
        %v1103 = vunpack.c.l.b16 %v1032
        %v1104 = vunpack.c.l.b16 %v1033
        %v1105 = vunpack.c.l.b16 %v1034
        %v1106 = vunpack.c.l.b16 %v1035
        %v1107 = vunpack.c.l.b16 %v1036
        %v1108 = vunpack.c.l.b16 %v1037
        %v1109 = vunpack.c.l.b16 %v1038
        %v1110 = vunpack.c.l.b16 %v1039
        %v1111 = vunpack.c.l.b16 %v1040
        %v1112 = vunpack.c.l.b16 %v1041
        %v1113 = vunpack.c.l.b16 %v1042
        %v1114 = vunpack.c.l.b16 %v1043
        %v1115 = vunpack.c.l.b16 %v1044
        %v1116 = vunpack.c.l.b16 %v1045
        %v1117 = vunpack.c.l.b16 %v1046
        %v1118 = vunpack.c.l.b16 %v1047
        %v1119 = vunpack.c.l.b16 %v1048
        %v1120 = vunpack.c.l.b16 %v1049
        %v1121 = vunpack.c.l.b16 %v1050
        %v1122 = vunpack.c.l.b16 %v1051
        %v1123 = vunpack.c.l.b16 %v1052
        %v1124 = vunpack.c.l.b16 %v1053
        %v1125 = vunpack.c.l.b16 %v1054
        %v1126 = vunpack.c.l.b16 %v1055
        %v1127 = vunpack.c.l.b16 %v1056
        %v1128 = vpack.c.b16 %v1097, %v1096
        %v1129 = vpack.c.b16 %v1099, %v1098
        %v1130 = vpack.c.b16 %v1101, %v1100
        %v1131 = vpack.c.b16 %v1103, %v1102
        %v1132 = vpack.c.b16 %v1105, %v1104
        %v1133 = vpack.c.b16 %v1107, %v1106
        %v1134 = vpack.c.b16 %v1109, %v1108
        %v1135 = vpack.c.b16 %v1111, %v1110
        %v1136 = vpack.c.b16 %v1113, %v1112
        %v1137 = vpack.c.b16 %v1115, %v1114
        %v1138 = vpack.c.b16 %v1117, %v1116
        %v1139 = vpack.c.b16 %v1119, %v1118
        %v1140 = vpack.c.b16 %v1121, %v1120
        %v1141 = vpack.c.b16 %v1123, %v1122
        %v1142 = vpack.c.b16 %v1125, %v1124
        %v1143 = vpack.c.b16 %v1127, %v1126
        %1160 = vmatprep.subr.bf16.mxu0 0
        %1161 = vmatpush1.bf16.msra.mxu0 %v1128
        %1162 = vmatprep.subr.bf16.mxu0 0
        %1163 = vmatpush1.bf16.msra.mxu0 %v1129
        %1164 = vmatprep.subr.bf16.mxu0 0
        %1165 = vmatpush1.bf16.msra.mxu0 %v1130
        %1166 = vmatprep.subr.bf16.mxu0 0
        %1167 = vmatpush1.bf16.msra.mxu0 %v1131
        %1168 = vmatprep.subr.bf16.mxu0 0
        %1169 = vmatpush1.bf16.msra.mxu0 %v1132
        %1170 = vmatprep.subr.bf16.mxu0 0
        %1171 = vmatpush1.bf16.msra.mxu0 %v1133
        %1172 = vmatprep.subr.bf16.mxu0 0
        %1173 = vmatpush1.bf16.msra.mxu0 %v1134
        %1174 = vmatprep.subr.bf16.mxu0 0
        %1175 = vmatpush1.bf16.msra.mxu0 %v1135
        %1176 = vmatprep.subr.bf16.mxu0 0
        %1177 = vmatpush1.bf16.msra.mxu0 %v1136
        %1178 = vmatprep.subr.bf16.mxu0 0
        %1179 = vmatpush1.bf16.msra.mxu0 %v1137
        %1180 = vmatprep.subr.bf16.mxu0 0
        %1181 = vmatpush1.bf16.msra.mxu0 %v1138
        %1182 = vmatprep.subr.bf16.mxu0 0
        %1183 = vmatpush1.bf16.msra.mxu0 %v1139
        %1184 = vmatprep.subr.bf16.mxu0 0
        %1185 = vmatpush1.bf16.msra.mxu0 %v1140
        %1186 = vmatprep.subr.bf16.mxu0 0
        %1187 = vmatpush1.bf16.msra.mxu0 %v1141
        %1188 = vmatprep.subr.bf16.mxu0 0
        %1189 = vmatpush1.bf16.msra.mxu0 %v1142
        %1190 = vmatprep.subr.bf16.mxu0 0
        %1191 = vmatpush1.bf16.msra.mxu0 %v1143
        %1192 = vmatprep.mubr.bf16.mxu0 %v1024
        %1193 = vmatmul.mubr.bf16.gmra.mrb[0].mxu0 %v1023
        %v1194 = vpop.f32.mrb[0].mxu0
        %v1195 = vadd.f32 %v1062, %v1194
        %v1196 = vpop.f32.mrb[0].mxu0
        %v1197 = vpop.f32.mrb[0].mxu0
        %v1198 = vpop.f32.mrb[0].mxu0
        %1199 = vdwg.mxu0
        %v1200 = vlaneseq
        %v1201 = vand.u32 %v1200, 127
        %vm1202 = vcmp.lt.s32.totalorder %v1201, 20
        %v1203 = vmul.f32 %v1195, 0.5
        %v1204 = vmul.f32 %v1203, 1.442695
        %v1205 = vpow.pop %v1204
        %v1206 = vsel %vm1202, %v1195, %v1205
        %vm1207 = vcmask 326656
        %1208 = vst.msk [vmem:[%s232] sm:$0xff] %vm1207, %v1206
        %s1209 = sand.u32 %s138, 1
        %s1210 = scalar_lea.sflag [#allocation4], %s1209
        %s1211 = sand.u32 %s138, 1
        %s1212 = smul.addr %s1211, 8
        %s1213 = scalar_lea.vmem [#allocation5], %s1212
        // Predicated region
        $region45: #{tpu_custom_call.1} parent=39 // pred_check
          %p1214 = pneg %p148
        $region46: #{tpu_custom_call.1} parent=39 // pred_check_branch
          %1216 = sbr.rel (%p1214) target = $region48
        $region47: #{tpu_custom_call.1} parent=39 // pred_region
          %s1218 = ssub.s32 128, 128
          %1219 = vsyncadd %s1210, %s1218
          %s1220 = smul.addr %s20, 128
          %s1221 = scalar_lea.hbm %s5, %s1220
          %s1223 = sshll.u32 %s1213, 4
          %s1224 = int_to_ptr.vmem [resolvable:$true] %s1223
          %1226 = dma.vmem_to_hbm [thread:$0]  %s1224, 128, %s1221, %s1210
        $region48: #{tpu_custom_call.1} parent=39 // pred_fallthru
          _
      $region40: #{tpu_custom_call.1} parent=5 // pred_fallthru
        _
      %p1227 = scmp.le.s32.totalorder 2, %s15
      // Predicated region
      $region49: #{tpu_custom_call.1} parent=5 // pred_check
        %p1228 = pneg %p1227
      $region50: #{tpu_custom_call.1} parent=5 // pred_check_branch
        %1230 = sbr.rel (%p1228) target = $region52
      $region51: #{tpu_custom_call.1} parent=5 // pred_region
        %s1231 = ssub.s32 %s15, 2
        // Predicated region
        $region53: #{tpu_custom_call.1} parent=51 // pred_check
          %p1232 = pneg %p154
        $region54: #{tpu_custom_call.1} parent=51 // pred_check_branch
          %1234 = sbr.rel (%p1232) target = $region56
        $region55: #{tpu_custom_call.1} parent=51 // pred_region
          %s1235 = sand.u32 %s139, 1
          %s1236 = scalar_lea.sflag [#allocation4], %s1235
          %s1237 = sand.u32 %s139, 1
          %s1238 = smul.addr %s1237, 8
          %s1239 = scalar_lea.vmem [#allocation5], %s1238
          %1240 = dma.done %s1236, 128
        $region56: #{tpu_custom_call.1} parent=51 // pred_fallthru
          _
      $region52: #{tpu_custom_call.1} parent=5 // pred_fallthru
        _
    $region6: #{tpu_custom_call.1} parent=1 // loop_footer
      %s19 = sadd.s32 1, %s15
    $region7: #{tpu_custom_call.1} parent=1 // loop_footer_branch
      %14 = sbr.rel target = $region3
    $region8: #{tpu_custom_call.1} parent=1 // loop_exit
      _
    %1241 = vsyncpa [#allocation3], 1
    %s1242 = scalar_lea.sflag [#allocation3], 1
    %1243 = vsyncpa %s1242, 1
    %1244 = vsyncpa [#allocation4], 1
    %s1245 = scalar_lea.sflag [#allocation4], 1
    %1246 = vsyncpa %s1245, 1

</llo_original>
